<compile_context>
chip_gen: v7x
topology: tpu7x:2x2x1
jax: 0.10.0
libtpu: 0.0.40
codegen_flags: <defaults>
</compile_context>

<pallas_src>
import math

import jax
import jax.numpy as jnp
from jax.experimental import pallas as pl
from jax.experimental.pallas import tpu as pltpu


# ----------------------------------------------------------------------------
# Kernels
# ----------------------------------------------------------------------------
def _identity_kernel(x_ref, o_ref):
    # forward: R(x) = x  (PyTorch does `input * 1.0`)
    o_ref[...] = x_ref[...]


def _neg_scale_kernel(coeff_ref, g_ref, o_ref):
    # backward: grad_in = -coeff * grad_out ; coeff is a scalar read from SMEM.
    c = coeff_ref[0]
    o_ref[...] = (g_ref[...].astype(jnp.float32) * (-c)).astype(o_ref.dtype)


# ----------------------------------------------------------------------------
# Tiling / pallas_call wrappers
# ----------------------------------------------------------------------------
# ~2 MiB per tile buffer; with input+output each double-buffered this is ~8 MiB
# of scratch — safe under default scoped VMEM on v5e (16 MiB), v6e (32 MiB) and
# v7x (32 MiB scoped / 64 MiB physical).
_PER_BUFFER_BYTES = 2 * 1024 * 1024


def _row_tile(rows, cols, itemsize):
    tb = max(1, _PER_BUFFER_BYTES // max(1, cols * itemsize))
    tb = min(rows, tb)
    if tb >= 8:
        tb = (tb // 8) * 8  # sublane-aligned second-to-last block dim
    return tb


def _compiler_params():
    return pltpu.CompilerParams(
        dimension_semantics=("parallel",),      # rows independent -> megacore shardable
        vmem_limit_bytes=64 * 1024 * 1024,
    )


def _pallas_identity_2d(x):
    R, C = x.shape
    tb = _row_tile(R, C, x.dtype.itemsize)
    nbytes = x.size * x.dtype.itemsize
    return pl.pallas_call(
        _identity_kernel,
        out_shape=jax.ShapeDtypeStruct((R, C), x.dtype),
        grid_spec=pl.GridSpec(
            grid=(pl.cdiv(R, tb),),
            in_specs=[pl.BlockSpec((tb, C), lambda i: (i, 0))],
            out_specs=pl.BlockSpec((tb, C), lambda i: (i, 0)),
        ),
        compiler_params=_compiler_params(),
        cost_estimate=pl.CostEstimate(
            flops=0, transcendentals=0, bytes_accessed=2 * nbytes),
    )(x)


def _pallas_neg_scale_2d(g, coeff):
    R, C = g.shape
    tb = _row_tile(R, C, g.dtype.itemsize)
    nbytes = g.size * g.dtype.itemsize
    return pl.pallas_call(
        _neg_scale_kernel,
        out_shape=jax.ShapeDtypeStruct((R, C), g.dtype),
        grid_spec=pl.GridSpec(
            grid=(pl.cdiv(R, tb),),
            in_specs=[
                pl.BlockSpec(memory_space=pltpu.MemorySpace.SMEM),  # coeff scalar
                pl.BlockSpec((tb, C), lambda i: (i, 0)),
            ],
            out_specs=pl.BlockSpec((tb, C), lambda i: (i, 0)),
        ),
        compiler_params=_compiler_params(),
        cost_estimate=pl.CostEstimate(
            flops=R * C, transcendentals=0, bytes_accessed=2 * nbytes),
    )(coeff, g)


def _as_2d(x):
    shape = x.shape
    if x.ndim == 0:
        return x.reshape(1, 1), shape
    if x.ndim == 1:
        return x.reshape(1, shape[0]), shape
    rows = math.prod(shape[:-1])
    return x.reshape(rows, shape[-1]), shape


# ----------------------------------------------------------------------------
# GradientReverseFunction  (torch.autograd.Function -> jax.custom_vjp)
# ----------------------------------------------------------------------------
@jax.custom_vjp
def grad_reverse(x, coeff):
    x2d, shape = _as_2d(x)
    return _pallas_identity_2d(x2d).reshape(shape)


def _grad_reverse_fwd(x, coeff):
    return grad_reverse(x, coeff), coeff


def _grad_reverse_bwd(coeff, g):
    g2d, shape = _as_2d(g)
    dx = _pallas_neg_scale_2d(g2d, coeff).reshape(shape)
    # coeff gets no gradient (PyTorch returns None for it).
    return dx, jnp.zeros_like(coeff)


grad_reverse.defvjp(_grad_reverse_fwd, _grad_reverse_bwd)


# ----------------------------------------------------------------------------
# WarmStartGradientReverseLayer
# ----------------------------------------------------------------------------
class WarmStartGradientReverseLayer:
    """Gradient reverse layer with warm-start lambda schedule (Pallas-backed)."""

    def __init__(self, alpha=1.0, lo=0.0, hi=1.0, max_iters=1000.0, auto_step=False):
        self.alpha = alpha
        self.lo = lo
        self.hi = hi
        self.iter_num = 0
        self.max_iters = max_iters
        self.auto_step = auto_step

    def _coeff(self):
        # lambda = 2(hi-lo)/(1+exp(-alpha*i/N)) - (hi-lo) + lo
        # TODO(synk): iter_num bookkeeping is host-side Python state (matches
        # the PyTorch module); it is not (and need not be) a device op.
        return float(
            2.0 * (self.hi - self.lo)
            / (1.0 + math.exp(-self.alpha * self.iter_num / self.max_iters))
            - (self.hi - self.lo) + self.lo
        )

    def forward(self, x):
        coeff = jnp.asarray([self._coeff()], dtype=jnp.float32)  # (1,) -> SMEM in bwd
        if self.auto_step:
            self.step()
        return grad_reverse(x, coeff)

    __call__ = forward

    def step(self):
        self.iter_num += 1


# ----------------------------------------------------------------------------
# Self-test
# ----------------------------------------------------------------------------
if __name__ == "__main__":
    key = jax.random.PRNGKey(0)
    k1, k2 = jax.random.split(key)

    B, D = 8, 256
    x = jax.random.normal(k1, (B, D), dtype=jnp.float32)
    g_out = jax.random.normal(k2, (B, D), dtype=jnp.float32)

    grl = WarmStartGradientReverseLayer(
        alpha=1.0, lo=0.0, hi=1.0, max_iters=10.0, auto_step=False)
    grl.iter_num = 3
    expected_coeff = (
        2.0 * (1.0 - 0.0) / (1.0 + math.exp(-1.0 * 3 / 10.0)) - (1.0 - 0.0) + 0.0
    )

    # Forward pass is the identity.
    y, vjp_fn = jax.vjp(grl.forward, x)
    y = jax.block_until_ready(y)
    assert jnp.allclose(y, x), "forward must be identity"

    # Backward pass reverses and scales the gradient: dx = -coeff * g_out.
    (dx,) = vjp_fn(g_out)
    dx = jax.block_until_ready(dx)
    assert jnp.allclose(dx, -expected_coeff * g_out, atol=1e-6, rtol=1e-6), (
        dx[0, :4], (-expected_coeff * g_out)[0, :4])

    # auto_step advances the warm-start schedule each forward call.
    grl_auto = WarmStartGradientReverseLayer(auto_step=True)
    _ = jax.block_until_ready(grl_auto(x))
    assert grl_auto.iter_num == 1
    assert abs(grl_auto._coeff()) > 0.0  # lambda moved off lo after one step

    print("KERNEL_OK")
</pallas_src>

<mosaic_0001>
module attributes {stable_mosaic.version = 11 : i64} {
  func.func @_identity_kernel(%arg0: i32, %arg1: memref<8x256xf32, #tpu.memory_space<vmem>>, %arg2: memref<8x256xf32, #tpu.memory_space<vmem>>) attributes {dimension_semantics = [#tpu.dimension_semantics<parallel>], iteration_bounds = array<i64: 1>, scalar_prefetch = 0 : i64, scratch_operands = 0 : i64, tpu.core_type = #tpu.core_type<tc>, window_params = [{transform_indices = @transform_0, window_bounds = array<i64: 8, 256>}, {transform_indices = @transform_1, window_bounds = array<i64: 8, 256>}]} {
    %c0 = arith.constant 0 : index
    %c0_0 = arith.constant 0 : index
    %0 = vector.load %arg1[%c0, %c0_0] : memref<8x256xf32, #tpu.memory_space<vmem>>, vector<8x256xf32>
    %c0_1 = arith.constant 0 : index
    %c0_2 = arith.constant 0 : index
    %1 = vector.load %arg2[%c0_1, %c0_2] : memref<8x256xf32, #tpu.memory_space<vmem>>, vector<8x256xf32>
    tpu.vector_store %arg2[%c0_1, %c0_2], %0 {strides = array<i32>} : memref<8x256xf32, #tpu.memory_space<vmem>>, vector<8x256xf32>,
    return
  }
  func.func @transform_0(%arg0: i32) -> (i32, i32) {
    %c0_i32 = arith.constant 0 : i32
    %c0_i32_0 = arith.constant 0 : i32
    return %arg0, %c0_i32 : i32, i32
  }
  func.func @transform_1(%arg0: i32) -> (i32, i32) {
    %c0_i32 = arith.constant 0 : i32
    %c0_i32_0 = arith.constant 0 : i32
    return %arg0, %c0_i32 : i32, i32
  }
}

</mosaic_0001>

<llo_original>
// kernel: tpu_custom_call.1
$region0: #{tpu_custom_call.1}
  #allocation0 [shape = 'u32[]', space=smem, size = 0x4, offset = 0x4, fixed_abs, tag = 'smem constant byte address 0x4 - core index']
  #allocation1 [shape = 'u32[144,128]{1,0:T(1,128)}', space=vmem, size = 0x12000, scoped, tag = 'internal scratch']
  %s0 = inlined_call_operand.hbm [shape: f32[8,256], index: 0, kind: input, shape index: {}]
  %s1 = inlined_call_operand.hbm [shape: f32[8,256], index: 1, kind: output, shape index: {}]
  %s2 = sld [smem:[#allocation0]]
  $region18: #{tpu_custom_call.1} parent=0
    _
  %s4 = ssub.s32 1, %s2
  %s5 = scalar_select 0, %s4, %s2
  $region1: #{tpu_custom_call.1} parent=0
    #allocation2 [shape = 'u8[8192]{0}', space=vmem, size = 0x2000, scoped, tag = 'input window, operand 0, single buffered']
    #allocation3 [shape = 's32[1]{0}', space=sflag, size = 0x4, scoped, tag = 'scoped memory for tpu_custom_call.1']
    #allocation4 [shape = 's32[1]{0}', space=sflag, size = 0x4, scoped, tag = 'scoped memory for tpu_custom_call.1']
    #allocation5 [shape = 'u8[8192]{0}', space=vmem, size = 0x2000, scoped, tag = 'output window, operand 0, single buffered']
    %6 = vsyncpa [#allocation3], 0
    %7 = vsyncpa [#allocation4], 0
    // Predicated region
    $region2: #{tpu_custom_call.1} parent=1 // pred_check
      _
    $region3: #{tpu_custom_call.1} parent=1 // pred_check_branch
      %9 = sbr.rel (0) target = $region5
    $region4: #{tpu_custom_call.1} parent=1 // pred_region
      %s11 = ssub.s32 256, 256
      %12 = vsyncadd [#allocation3], %s11
      %s14 = sshll.u32 [#allocation2], 4
      %s15 = int_to_ptr.vmem [resolvable:$true] %s14
      %17 = dma.hbm_to_vmem [thread:$0]  %s0, 256, %s15, [#allocation3]
    $region5: #{tpu_custom_call.1} parent=1 // pred_fallthru
      _
    // Predicated region
    $region6: #{tpu_custom_call.1} parent=1 // pred_check
      _
    $region7: #{tpu_custom_call.1} parent=1 // pred_check_branch
      %19 = sbr.rel (0) target = $region9
    $region8: #{tpu_custom_call.1} parent=1 // pred_region
      %20 = dma.done [#allocation3], 256
    $region9: #{tpu_custom_call.1} parent=1 // pred_fallthru
      _
    %v21 = vld [vmem:[#allocation2] sm:$0xff]
    %v22 = vld [vmem:[#allocation2 + $0x8] sm:$0xff]
    %23 = vst [vmem:[#allocation5] sm:$0xff] %v21
    %24 = vst [vmem:[#allocation5 + $0x8] sm:$0xff] %v22
    // Predicated region
    $region10: #{tpu_custom_call.1} parent=1 // pred_check
      _
    $region11: #{tpu_custom_call.1} parent=1 // pred_check_branch
      %26 = sbr.rel (0) target = $region13
    $region12: #{tpu_custom_call.1} parent=1 // pred_region
      %s28 = ssub.s32 256, 256
      %29 = vsyncadd [#allocation4], %s28
      %s31 = sshll.u32 [#allocation5], 4
      %s32 = int_to_ptr.vmem [resolvable:$true] %s31
      %34 = dma.vmem_to_hbm [thread:$0]  %s32, 256, %s1, [#allocation4]
    $region13: #{tpu_custom_call.1} parent=1 // pred_fallthru
      _
    // Predicated region
    $region14: #{tpu_custom_call.1} parent=1 // pred_check
      _
    $region15: #{tpu_custom_call.1} parent=1 // pred_check_branch
      %36 = sbr.rel (0) target = $region17
    $region16: #{tpu_custom_call.1} parent=1 // pred_region
      %37 = dma.done [#allocation4], 256
    $region17: #{tpu_custom_call.1} parent=1 // pred_fallthru
      _
    %38 = vsyncpa [#allocation3], 1
    %39 = vsyncpa [#allocation4], 1

</llo_original>
